<compile_context>
chip_gen: v7x
topology: tpu7x:2x2x1
jax: 0.10.0
libtpu: 0.0.40
codegen_flags: <defaults>
</compile_context>

<pallas_src>
import jax
import jax.numpy as jnp
from jax.experimental import pallas as pl
from jax.experimental.pallas import tpu as pltpu


# ----------------------------- Pallas kernels --------------------------------
def _head_matmul_kernel_f32(x_ref, w_ref, b_ref, o_ref):
    # f32 output: the output block is resident across the (last) K grid axis,
    # so accumulate directly into it. Bias initializes it at k == 0.
    @pl.when(pl.program_id(2) == 0)
    def _():
        o_ref[...] = jnp.broadcast_to(b_ref[...], o_ref.shape)

    w = w_ref[...]                                   # bf16 weight tile
    o_ref[...] += jnp.dot(x_ref[...].astype(w.dtype), w,
                          preferred_element_type=jnp.float32)


def _head_matmul_kernel_cast(x_ref, w_ref, b_ref, o_ref, acc_ref):
    # Non-f32 output: f32 VMEM accumulator, cast exactly once at k == last.
    k = pl.program_id(2)

    @pl.when(k == 0)
    def _():
        acc_ref[...] = jnp.broadcast_to(b_ref[...], acc_ref.shape)

    w = w_ref[...]
    acc_ref[...] += jnp.dot(x_ref[...].astype(w.dtype), w,
                            preferred_element_type=jnp.float32)

    @pl.when(k == pl.num_programs(2) - 1)
    def _():
        o_ref[...] = acc_ref[...].astype(o_ref.dtype)


# ----------------------------- helpers ---------------------------------------
def _cdiv(a: int, b: int) -> int:
    return -(-a // b)


def _round_up(x: int, m: int) -> int:
    return (x + m - 1) // m * m


def _pick_lane_tile(desired: int, total_pad128: int) -> int:
    """Largest multiple of 128 <= desired that exactly divides total_pad128."""
    t = min(_round_up(desired, 128), total_pad128)
    t = (t // 128) * 128
    while total_pad128 % t != 0:
        t -= 128
    return t


def _vmem_limit_bytes() -> int:
    cap = 64 * 1024 * 1024          # conservative default (v7x per-TC VMEM)
    try:
        info = pltpu.get_tpu_info()
        cap = int(getattr(info, "vmem_capacity_bytes", cap) or cap)
    except Exception:
        pass
    # ~3/4 of physical VMEM, capped: ~48 MiB on v7x, ~96 MiB on v5e/v6e.
    return max(32 * 1024 * 1024, min(3 * cap // 4, 96 * 1024 * 1024))


# ----------------------------- wrapper ----------------------------------------
def linear_head(x2d: jax.Array, w: jax.Array, b: jax.Array,
                *, tm: int = 512, tn: int = 512, tk: int = 1024,
                out_dtype=None, force_pallas: bool = False) -> jax.Array:
    """Compute x2d @ w + b with a tiled (M, N, K) Pallas matmul on TPU."""
    n, h = x2d.shape
    h2, c = w.shape
    assert h == h2, f"hidden mismatch: {h} vs {h2}"
    out_dtype = jnp.dtype(out_dtype or x2d.dtype)

    # Tiny heads (e.g. the demo's 16x32x16): grid-step / launch / padding
    # overhead dominates -> use the fused XLA dot directly.
    if not force_pallas and (n * h * c) < (1 << 21):
        out = jnp.dot(x2d.astype(jnp.float32), w.astype(jnp.float32),
                      preferred_element_type=jnp.float32) + b.astype(jnp.float32)
        return out.astype(out_dtype)

    compute_dtype = jnp.bfloat16        # native MXU input on v5e/v6e/v7x
    h_pad = _round_up(h, 128)
    c_pad = _round_up(c, 128)

    # Lane-facing tiles: multiples of 128 that exactly divide the 128-rounded
    # H / C, so only the small weight/bias arrays ever need zero padding.
    tk = _pick_lane_tile(tk, h_pad)
    tn = _pick_lane_tile(tn, c_pad)
    tm = max(8, min(_round_up(tm, 8), _round_up(n, 8)))

    m_blocks = _cdiv(n, tm)
    n_blocks = c_pad // tn
    k_blocks = h_pad // tk

    # v7x has 2 TensorCores: guarantee >= 2 parallel (M, N) blocks.
    if m_blocks * n_blocks < 2 and n > 8:
        tm = max(8, _round_up(_cdiv(n, 2), 8))
        m_blocks = _cdiv(n, tm)

    # Activations: no HBM pad copy for M (ragged last block is masked by the
    # Pallas boundary handling); K only needs zero padding when H is not
    # 128-aligned (padded K would otherwise corrupt the reduction).
    x_in = x2d
    if h_pad != h:
        x_in = jnp.pad(x_in, ((0, 0), (0, h_pad - h)))
    if x_in.dtype != compute_dtype and n_blocks > 2:
        # X is streamed n_blocks times: one bf16 cast pass halves that traffic.
        x_in = x_in.astype(compute_dtype)
    # Otherwise the bf16 cast happens per tile inside the kernel (VPU-side,
    # hidden under the MXU) with zero extra HBM traffic.

    w_p = w.astype(compute_dtype)
    if h_pad != h or c_pad != c:
        w_p = jnp.pad(w_p, ((0, h_pad - h), (0, c_pad - c)))
    b_p = jnp.pad(b, (0, c_pad - c)) if c_pad != c else b
    b2d = b_p.reshape(1, c_pad).astype(jnp.float32)

    grid = (m_blocks, n_blocks, k_blocks)

    cost = pl.CostEstimate(
        flops=2 * n * h_pad * c_pad,
        transcendentals=0,
        bytes_accessed=(x_in.size * x_in.dtype.itemsize * n_blocks   # X re-reads
                        + w_p.size * w_p.dtype.itemsize * m_blocks   # W re-reads
                        + b2d.size * b2d.dtype.itemsize
                        + n * c_pad * out_dtype.itemsize),
    )

    if out_dtype == jnp.dtype(jnp.float32):
        kernel, scratch = _head_matmul_kernel_f32, []
    else:
        kernel, scratch = _head_matmul_kernel_cast, [pltpu.VMEM((tm, tn), jnp.float32)]

    out = pl.pallas_call(
        kernel,
        out_shape=jax.ShapeDtypeStruct((n, c_pad), out_dtype),
        grid=grid,
        in_specs=[
            pl.BlockSpec((tm, tk), lambda i, j, k: (i, k)),   # activations
            pl.BlockSpec((tk, tn), lambda i, j, k: (k, j)),   # weights
            pl.BlockSpec((1, tn), lambda i, j, k: (0, j)),    # bias
        ],
        out_specs=pl.BlockSpec((tm, tn), lambda i, j, k: (i, j)),
        scratch_shapes=scratch,
        compiler_params=pltpu.CompilerParams(
            # M, N independent (megacore-shardable); K reduction is last.
            dimension_semantics=("parallel", "parallel", "arbitrary"),
            vmem_limit_bytes=_vmem_limit_bytes(),
        ),
        cost_estimate=cost,
    )(x_in, w_p, b2d)

    return out[:, :c] if c_pad != c else out


# --------------------------- Predictor (JAX port) -----------------------------
class PredictorAbstractPallas:
    """JAX/Pallas port of PredictorAbstract's concrete forward behavior.

    forward(body_output) -> head(body_output), where head is a dense
    projection from hidden size -> num_classes.
    """

    POOLERS = ("first", "max", "relu-max", "sum", "avg")

    def __init__(self, hidden_size: int, num_classes: int):
        # Deterministic synthetic parameter init (no checkpoint loading).
        kw, kb = jax.random.split(jax.random.PRNGKey(42))
        scale = 1.0 / jnp.sqrt(jnp.float32(hidden_size))
        # Weights stored in bf16: native MXU input dtype on all current TPUs.
        # TODO(synk): fp8 (e4m3) weight storage on v7x would halve W bytes again.
        self.weight = (
            jax.random.uniform(kw, (hidden_size, num_classes), jnp.float32,
                               minval=-1.0, maxval=1.0) * scale
        ).astype(jnp.bfloat16)
        self.bias = (
            jax.random.uniform(kb, (num_classes,), jnp.float32,
                               minval=-1.0, maxval=1.0) * scale
        )

    def forward(self, body_output: jax.Array) -> jax.Array:
        # body_output: [B, S, H]  ->  logits: [B, S, C]
        bsz, seq, hid = body_output.shape
        x2d = body_output.reshape(bsz * seq, hid)
        logits2d = linear_head(x2d, self.weight, self.bias,
                               out_dtype=jnp.float32)
        return logits2d.reshape(bsz, seq, -1)

    def __call__(self, body_output: jax.Array) -> jax.Array:
        return self.forward(body_output)

    # torch.zeros((n_samples, max_len_target), dtype=torch.int64) equivalent.
    @staticmethod
    def _create_labels_ids(n_samples: int, max_len_target: int, data: list):
        # TODO(synk): JAX downcasts int64->int32 unless x64 is enabled; the
        # torch original returns int64. `data` is unused upstream as well.
        return jnp.zeros((n_samples, max_len_target), dtype=jnp.int64)


# ----------------------------------- main --------------------------------------
if __name__ == "__main__":
    # Small shapes implied by the module: [B, S, H] -> [B, S, C].
    batch, seq, hidden, num_classes = 2, 8, 32, 16

    key = jax.random.PRNGKey(0)
    body_output = jax.random.normal(key, (batch, seq, hidden), jnp.float32)

    predictor = PredictorAbstractPallas(hidden_size=hidden,
                                        num_classes=num_classes)

    logits = predictor(body_output)          # small-problem bypass path
    jax.block_until_ready(logits)

    ref = (body_output.reshape(-1, hidden)
           @ predictor.weight.astype(jnp.float32) + predictor.bias)
    ref = ref.reshape(batch, seq, num_classes)
    assert logits.shape == (batch, seq, num_classes)
    assert jnp.allclose(logits, ref, atol=1e-4, rtol=1e-4)

    # Pallas check 1: multi-tile (i, j, k) grid = (3, 3, 2), bf16 output path
    # (scratch f32 accumulator, bias at k==0, cast at k==last).
    xa = jax.random.normal(jax.random.PRNGKey(1), (384, 512), jnp.float32)
    wa = jax.random.normal(jax.random.PRNGKey(2), (512, 384), jnp.float32) * 0.05
    ba = jax.random.normal(jax.random.PRNGKey(3), (384,), jnp.float32)
    out_a = linear_head(xa, wa, ba, tm=128, tn=128, tk=256,
                        out_dtype=jnp.bfloat16, force_pallas=True)
    jax.block_until_ready(out_a)
    ref_a = jnp.dot(xa.astype(jnp.bfloat16), wa.astype(jnp.bfloat16),
                    preferred_element_type=jnp.float32) + ba
    assert jnp.allclose(out_a.astype(jnp.float32), ref_a, atol=5e-2, rtol=5e-2)

    # Pallas check 2: default tiles, ragged M (no activation padding),
    # padded C sliced off, f32 output accumulated directly in o_ref.
    xb = jax.random.normal(jax.random.PRNGKey(4), (300, 256), jnp.float32)
    wb = jax.random.normal(jax.random.PRNGKey(5), (256, 200), jnp.float32) * 0.05
    bb = jax.random.normal(jax.random.PRNGKey(6), (200,), jnp.float32)
    out_b = linear_head(xb, wb, bb, out_dtype=jnp.float32, force_pallas=True)
    jax.block_until_ready(out_b)
    ref_b = jnp.dot(xb.astype(jnp.bfloat16), wb.astype(jnp.bfloat16),
                    preferred_element_type=jnp.float32) + bb
    assert out_b.shape == (300, 200)
    assert jnp.allclose(out_b, ref_b, atol=3e-2, rtol=3e-2)

    labels = predictor._create_labels_ids(batch, seq, data=[])
    assert labels.shape == (batch, seq)

    print("KERNEL_OK")
</pallas_src>

<mosaic_0001>
module attributes {stable_mosaic.version = 11 : i64} {
  func.func @_head_matmul_kernel_cast(%arg0: i32, %arg1: i32, %arg2: i32, %arg3: memref<128x256xbf16, #tpu.memory_space<vmem>>, %arg4: memref<256x128xbf16, #tpu.memory_space<vmem>>, %arg5: memref<1x128xf32, #tpu.memory_space<vmem>>, %arg6: memref<128x128xbf16, #tpu.memory_space<vmem>>, %arg7: memref<128x128xf32, #tpu.memory_space<vmem>>) attributes {dimension_semantics = [#tpu.dimension_semantics<parallel>, #tpu.dimension_semantics<parallel>, #tpu.dimension_semantics<arbitrary>], iteration_bounds = array<i64: 3, 3, 2>, scalar_prefetch = 0 : i64, scratch_operands = 1 : i64, tpu.core_type = #tpu.core_type<tc>, window_params = [{transform_indices = @transform_0, window_bounds = array<i64: 128, 256>}, {transform_indices = @transform_1, window_bounds = array<i64: 256, 128>}, {transform_indices = @transform_2, window_bounds = array<i64: 1, 128>}, {transform_indices = @transform_3, window_bounds = array<i64: 128, 128>}]} {
    %c0_i32 = arith.constant 0 : i32
    %0 = arith.cmpi eq, %arg2, %c0_i32 : i32
    %1 = arith.extui %0 : i1 to i32
    %c0_i32_0 = arith.constant 0 : i32
    %2 = arith.cmpi ne, %1, %c0_i32_0 : i32
    scf.if %2 {
      %c0_9 = arith.constant 0 : index
      %c0_10 = arith.constant 0 : index
      %12 = vector.load %arg5[%c0_9, %c0_10] : memref<1x128xf32, #tpu.memory_space<vmem>>, vector<1x128xf32>
      %13 = vector.shape_cast %12 : vector<1x128xf32> to vector<1x128xf32>
      %14 = vector.broadcast %13 : vector<1x128xf32> to vector<128x128xf32>
      %c0_11 = arith.constant 0 : index
      %c0_12 = arith.constant 0 : index
      %15 = vector.load %arg7[%c0_11, %c0_12] : memref<128x128xf32, #tpu.memory_space<vmem>>, vector<128x128xf32>
      tpu.vector_store %arg7[%c0_11, %c0_12], %14 {strides = array<i32>} : memref<128x128xf32, #tpu.memory_space<vmem>>, vector<128x128xf32>,
    } else {
    }
    %c0 = arith.constant 0 : index
    %c0_1 = arith.constant 0 : index
    %3 = vector.load %arg4[%c0, %c0_1] : memref<256x128xbf16, #tpu.memory_space<vmem>>, vector<256x128xbf16>
    %c0_2 = arith.constant 0 : index
    %c0_3 = arith.constant 0 : index
    %4 = vector.load %arg7[%c0_2, %c0_3] : memref<128x128xf32, #tpu.memory_space<vmem>>, vector<128x128xf32>
    %c0_4 = arith.constant 0 : index
    %c0_5 = arith.constant 0 : index
    %5 = vector.load %arg3[%c0_4, %c0_5] : memref<128x256xbf16, #tpu.memory_space<vmem>>, vector<128x256xbf16>
    %cst = arith.constant dense<0.000000e+00> : vector<128x128xf32>
    %6 = tpu.matmul %5, %3, %cst {dimension_numbers = #tpu.dot_dimension_numbers<[1], [0], [0], [1], [0, 0, 1, 1], [], []>} : vector<128x256xbf16>, vector<256x128xbf16>, vector<128x128xf32> -> vector<128x128xf32>
    %7 = arith.addf %4, %6 : vector<128x128xf32>
    %c0_6 = arith.constant 0 : index
    %c0_7 = arith.constant 0 : index
    %8 = vector.load %arg7[%c0_6, %c0_7] : memref<128x128xf32, #tpu.memory_space<vmem>>, vector<128x128xf32>
    tpu.vector_store %arg7[%c0_6, %c0_7], %7 {strides = array<i32>} : memref<128x128xf32, #tpu.memory_space<vmem>>, vector<128x128xf32>,
    %c1_i32 = arith.constant 1 : i32
    %9 = arith.cmpi eq, %arg2, %c1_i32 : i32
    %10 = arith.extui %9 : i1 to i32
    %c0_i32_8 = arith.constant 0 : i32
    %11 = arith.cmpi ne, %10, %c0_i32_8 : i32
    scf.if %11 {
      %c0_9 = arith.constant 0 : index
      %c0_10 = arith.constant 0 : index
      %12 = vector.load %arg7[%c0_9, %c0_10] : memref<128x128xf32, #tpu.memory_space<vmem>>, vector<128x128xf32>
      %13 = arith.truncf %12 : vector<128x128xf32> to vector<128x128xbf16>
      %c0_11 = arith.constant 0 : index
      %c0_12 = arith.constant 0 : index
      %14 = vector.load %arg6[%c0_11, %c0_12] : memref<128x128xbf16, #tpu.memory_space<vmem>>, vector<128x128xbf16>
      tpu.vector_store %arg6[%c0_11, %c0_12], %13 {strides = array<i32>} : memref<128x128xbf16, #tpu.memory_space<vmem>>, vector<128x128xbf16>,
    } else {
    }
    return
  }
  func.func @transform_0(%arg0: i32, %arg1: i32, %arg2: i32) -> (i32, i32) {
    %c0_i32 = arith.constant 0 : i32
    return %arg0, %arg2 : i32, i32
  }
  func.func @transform_1(%arg0: i32, %arg1: i32, %arg2: i32) -> (i32, i32) {
    %c0_i32 = arith.constant 0 : i32
    return %arg2, %arg1 : i32, i32
  }
  func.func @transform_2(%arg0: i32, %arg1: i32, %arg2: i32) -> (i32, i32) {
    %c0_i32 = arith.constant 0 : i32
    %c0_i32_0 = arith.constant 0 : i32
    return %c0_i32, %arg1 : i32, i32
  }
  func.func @transform_3(%arg0: i32, %arg1: i32, %arg2: i32) -> (i32, i32) {
    %c0_i32 = arith.constant 0 : i32
    return %arg0, %arg1 : i32, i32
  }
}

</mosaic_0001>

<llo_original>
// kernel: tpu_custom_call.1
$region0: #{tpu_custom_call.1}
  #allocation0 [shape = 'u32[]', space=smem, size = 0x4, offset = 0x4, fixed_abs, tag = 'smem constant byte address 0x4 - core index']
  #allocation1 [shape = 'u32[144,128]{1,0:T(1,128)}', space=vmem, size = 0x12000, scoped, tag = 'internal scratch']
  #allocation2 [shape = 'f32[128,128]{1,0:T(8,128)}', space=vmem, size = 0x10000, scoped, tag = 'scratch operand']
  %s0 = inlined_call_operand.hbm [shape: bf16[384,512], index: 0, kind: input, shape index: {}]
  %s1 = inlined_call_operand.hbm [shape: bf16[512,384], index: 1, kind: input, shape index: {}]
  %s2 = inlined_call_operand.vmem [shape: f32[1,384], index: 2, kind: input, shape index: {}]
  %s3 = inlined_call_operand.hbm [shape: bf16[384,384], index: 3, kind: output, shape index: {}]
  %s4 = sld [smem:[#allocation0]]
  $region61: #{tpu_custom_call.1} parent=0
    _
  %s6 = ssub.s32 1, %s4
  %s7 = scalar_select 0, %s6, %s4
  $region1: #{tpu_custom_call.1} parent=0
    #allocation3 [shape = 'u8[131072]{0}', space=vmem, size = 0x20000, scoped, tag = 'input window, operand 0']
    #allocation4 [shape = 's32[2]{0}', space=sflag, size = 0x8, scoped, tag = 'scoped memory for tpu_custom_call.1']
    #allocation5 [shape = 's32[2]{0}', space=sflag, size = 0x8, scoped, tag = 'scoped memory for tpu_custom_call.1']
    #allocation6 [shape = 'u8[131072]{0}', space=vmem, size = 0x20000, scoped, tag = 'input window, operand 1']
    #allocation7 [shape = 's32[2]{0}', space=sflag, size = 0x8, scoped, tag = 'scoped memory for tpu_custom_call.1']
    #allocation8 [shape = 'u8[65536]{0}', space=vmem, size = 0x10000, scoped, tag = 'output window, operand 0']
    %8 = vsyncpa [#allocation4], 0
    %s9 = scalar_lea.sflag [#allocation4], 1
    %10 = vsyncpa %s9, 0
    %11 = vsyncpa [#allocation7], 0
    %s12 = scalar_lea.sflag [#allocation7], 1
    %13 = vsyncpa %s12, 0
    %14 = vsyncpa [#allocation5], 0
    %s15 = scalar_lea.sflag [#allocation5], 1
    %16 = vsyncpa %s15, 0
    loop: start=0, step=1, limit=20
    $region2: #{tpu_custom_call.1} parent=1 // loop_pre_header
      _
    $region3: #{tpu_custom_call.1} parent=1 // loop_header
      %s18 = sphi 0, %s22
      %p19 = scmp.ge.s32.totalorder %s18, 20
      %s25 = sphi 0, %s44
      %s26 = sphi 0, %s40
      %s27 = sphi 0, %s36
      %s28 = sphi 0, %s25
      %s29 = sphi 0, %s26
      %s30 = sphi 0, %s27
      %s31 = sphi 0, %s28
      %s32 = sphi 0, %s29
      %s33 = sphi 0, %s30
      %s49 = sphi 0, %s51
      %s52 = sphi 0, %s49
      %s53 = sphi 0, %s52
      %s69 = sphi 0, %s53
      %s77 = sphi 0, %s79
      %s80 = sphi 0, %s77
      %s81 = sphi 0, %s80
      %s97 = sphi 0, %s81
      %s103 = sphi 0, %s105
      %s106 = sphi 0, %s103
      %s107 = sphi 0, %s106
      %s123 = sphi 0, %s107
      %s131 = sphi 0, %s133
      %s134 = sphi 0, %s131
      %s135 = sphi 0, %s134
      %s151 = sphi 0, %s135
    $region4: #{tpu_custom_call.1} parent=1 // loop_header_branch
      %21 = sbr.rel (%p19) target = $region8
    $region5: #{tpu_custom_call.1} parent=1 // loop_body
      %s23 = ssub.s32 %s18, 1
      %s24 = ssub.s32 %s18, 2
      %s34 = sadd.s32 1, %s27
      %p35 = scmp.ge.s32.totalorder %s34, 2
      %s36 = scalar_select %p35, 0, %s34
      %s37 = sadd.s32 1, %s26
      %s38 = scalar_select %p35, %s37, %s26
      %p39 = scmp.ge.s32.totalorder %s38, 3
      %s40 = scalar_select %p39, 0, %s38
      %s41 = sadd.s32 1, %s25
      %s42 = scalar_select %p39, %s41, %s25
      %p43 = scmp.ge.s32.totalorder %s42, 3
      %s44 = scalar_select %p43, 0, %s42
      %s45 = ssub.s32 %s25, %s44
      %s46 = ssub.s32 %s27, %s36
      %s47 = sor.u32 %s45, %s46
      %p48 = scmp.eq.s32.totalorder %s47, 0
      %s50 = sadd.s32 %s49, 1
      %s51 = scalar_select %p48, %s49, %s50
      %p54 = pneg %p48
      %p55 = scmp.eq.s32.totalorder %s18, 17
      %p56 = por %p54, %p55
      %p57 = scmp.ne.s32.totalorder %s49, %s52
      %p58 = scmp.eq.s32.totalorder %s18, 0
      %p59 = por %p57, %p58
      %p60 = scmp.ne.s32.totalorder %s49, %s52
      %p61 = scmp.eq.s32.totalorder %s23, 17
      %p62 = por %p60, %p61
      %p63 = scmp.ne.s32.totalorder %s52, %s53
      %p64 = scmp.eq.s32.totalorder %s23, 0
      %p65 = por %p63, %p64
      %p66 = scmp.ne.s32.totalorder %s52, %s53
      %p67 = scmp.eq.s32.totalorder %s24, 17
      %p68 = por %p66, %p67
      %p70 = scmp.ne.s32.totalorder %s53, %s69
      %p71 = scmp.eq.s32.totalorder %s24, 0
      %p72 = por %p70, %p71
      %s73 = ssub.s32 %s27, %s36
      %s74 = ssub.s32 %s26, %s40
      %s75 = sor.u32 %s73, %s74
      %p76 = scmp.eq.s32.totalorder %s75, 0
      %s78 = sadd.s32 %s77, 1
      %s79 = scalar_select %p76, %s77, %s78
      %p82 = pneg %p76
      %p83 = scmp.eq.s32.totalorder %s18, 17
      %p84 = por %p82, %p83
      %p85 = scmp.ne.s32.totalorder %s77, %s80
      %p86 = scmp.eq.s32.totalorder %s18, 0
      %p87 = por %p85, %p86
      %p88 = scmp.ne.s32.totalorder %s77, %s80
      %p89 = scmp.eq.s32.totalorder %s23, 17
      %p90 = por %p88, %p89
      %p91 = scmp.ne.s32.totalorder %s80, %s81
      %p92 = scmp.eq.s32.totalorder %s23, 0
      %p93 = por %p91, %p92
      %p94 = scmp.ne.s32.totalorder %s80, %s81
      %p95 = scmp.eq.s32.totalorder %s24, 17
      %p96 = por %p94, %p95
      %p98 = scmp.ne.s32.totalorder %s81, %s97
      %p99 = scmp.eq.s32.totalorder %s24, 0
      %p100 = por %p98, %p99
      %s101 = ssub.s32 %s26, %s40
      %p102 = scmp.eq.s32.totalorder %s101, 0
      %s104 = sadd.s32 %s103, 1
      %s105 = scalar_select %p102, %s103, %s104
      %p108 = pneg %p102
      %p109 = scmp.eq.s32.totalorder %s18, 17
      %p110 = por %p108, %p109
      %p111 = scmp.ne.s32.totalorder %s103, %s106
      %p112 = scmp.eq.s32.totalorder %s18, 0
      %p113 = por %p111, %p112
      %p114 = scmp.ne.s32.totalorder %s103, %s106
      %p115 = scmp.eq.s32.totalorder %s23, 17
      %p116 = por %p114, %p115
      %p117 = scmp.ne.s32.totalorder %s106, %s107
      %p118 = scmp.eq.s32.totalorder %s23, 0
      %p119 = por %p117, %p118
      %p120 = scmp.ne.s32.totalorder %s106, %s107
      %p121 = scmp.eq.s32.totalorder %s24, 17
      %p122 = por %p120, %p121
      %p124 = scmp.ne.s32.totalorder %s107, %s123
      %p125 = scmp.eq.s32.totalorder %s24, 0
      %p126 = por %p124, %p125
      %s127 = ssub.s32 %s25, %s44
      %s128 = ssub.s32 %s26, %s40
      %s129 = sor.u32 %s127, %s128
      %p130 = scmp.eq.s32.totalorder %s129, 0
      %s132 = sadd.s32 %s131, 1
      %s133 = scalar_select %p130, %s131, %s132
      %p136 = pneg %p130
      %p137 = scmp.eq.s32.totalorder %s18, 17
      %p138 = por %p136, %p137
      %p139 = scmp.ne.s32.totalorder %s131, %s134
      %p140 = scmp.eq.s32.totalorder %s18, 0
      %p141 = por %p139, %p140
      %p142 = scmp.ne.s32.totalorder %s131, %s134
      %p143 = scmp.eq.s32.totalorder %s23, 17
      %p144 = por %p142, %p143
      %p145 = scmp.ne.s32.totalorder %s134, %s135
      %p146 = scmp.eq.s32.totalorder %s23, 0
      %p147 = por %p145, %p146
      %p148 = scmp.ne.s32.totalorder %s134, %s135
      %p149 = scmp.eq.s32.totalorder %s24, 17
      %p150 = por %p148, %p149
      %p152 = scmp.ne.s32.totalorder %s135, %s151
      %p153 = scmp.eq.s32.totalorder %s24, 0
      %p154 = por %p152, %p153
      %p155 = scmp.le.s32.totalorder 1, %s18
      %p156 = scmp.lt.s32.totalorder %s18, 19
      %p157 = pnand %p155, %p156
      %p158 = pneg %p157
      // Predicated region
      $region9: #{tpu_custom_call.1} parent=5 // pred_check
        _
      $region10: #{tpu_custom_call.1} parent=5 // pred_check_branch
        %160 = sbr.rel (%p157) target = $region12
      $region11: #{tpu_custom_call.1} parent=5 // pred_region
        %s161 = ssub.s32 %s18, 1
      $region12: #{tpu_custom_call.1} parent=5 // pred_fallthru
        _
      %p162 = scmp.lt.s32.totalorder %s18, 18
      // Predicated region
      $region13: #{tpu_custom_call.1} parent=5 // pred_check
        %p163 = pneg %p162
      $region14: #{tpu_custom_call.1} parent=5 // pred_check_branch
        %165 = sbr.rel (%p163) target = $region16
      $region15: #{tpu_custom_call.1} parent=5 // pred_region
        // Predicated region
        $region17: #{tpu_custom_call.1} parent=15 // pred_check
          %p166 = pneg %p59
        $region18: #{tpu_custom_call.1} parent=15 // pred_check_branch
          %168 = sbr.rel (%p166) target = $region20
        $region19: #{tpu_custom_call.1} parent=15 // pred_region
          %s169 = sand.u32 %s49, 1
          %s170 = scalar_lea.sflag [#allocation4], %s169
          %s171 = sand.u32 %s49, 1
          %s172 = smul.addr %s171, 128
          %s173 = scalar_lea.vmem [#allocation3], %s172
          %s174 = smul.u32 16, %s25
          %s175 = smul.u32 2, %s27
          %s177 = ssub.s32 2048, 2048
          %178 = vsyncadd %s170, %s177
          %s179 = smul.addr %s174, 4
          %s180 = sadd.s32 %s175, %s179
          %s181 = smul.addr %s180, 64
          %s182 = scalar_lea.hbm %s0, %s181
          %s183 = sshll.u32 %s173, 4
          %s184 = int_to_ptr.vmem [resolvable:$true] %s183
          %189 = dma.hbm_to_vmem [thread:$0]  %s182, 2048, %s184, %s170, 256, 128, 8
        $region20: #{tpu_custom_call.1} parent=15 // pred_fallthru
          _
        // Predicated region
        $region21: #{tpu_custom_call.1} parent=15 // pred_check
          %p190 = pneg %p87
        $region22: #{tpu_custom_call.1} parent=15 // pred_check_branch
          %192 = sbr.rel (%p190) target = $region24
        $region23: #{tpu_custom_call.1} parent=15 // pred_region
          %s193 = sand.u32 %s77, 1
          %s194 = scalar_lea.sflag [#allocation7], %s193
          %s195 = sand.u32 %s77, 1
          %s196 = smul.addr %s195, 128
          %s197 = scalar_lea.vmem [#allocation6], %s196
          %s198 = smul.u32 32, %s27
          %s200 = ssub.s32 2048, 2048
          %201 = vsyncadd %s194, %s200
          %s202 = smul.addr %s198, 3
          %s203 = sadd.s32 %s26, %s202
          %s204 = smul.addr %s203, 64
          %s205 = scalar_lea.hbm %s1, %s204
          %s206 = sshll.u32 %s197, 4
          %s207 = int_to_ptr.vmem [resolvable:$true] %s206
          %212 = dma.hbm_to_vmem [thread:$0]  %s205, 2048, %s207, %s194, 192, 64, 4
        $region24: #{tpu_custom_call.1} parent=15 // pred_fallthru
          _
        // Predicated region
        $region25: #{tpu_custom_call.1} parent=15 // pred_check
          %p213 = pneg %p113
        $region26: #{tpu_custom_call.1} parent=15 // pred_check_branch
          %215 = sbr.rel (%p213) target = $region28
        $region27: #{tpu_custom_call.1} parent=15 // pred_region
          %p216 = scmp.lt.s32.totalorder %s26, 2
          %s217 = scalar_select %p216, %s26, 2
          %s218 = scalar_lea.vmem %s2, %s217
        $region28: #{tpu_custom_call.1} parent=15 // pred_fallthru
          _
      $region16: #{tpu_custom_call.1} parent=5 // pred_fallthru
        _
      %p219 = scmp.le.s32.totalorder 1, %s18
      %p220 = scmp.lt.s32.totalorder %s18, 19
      %p221 = pnand %p219, %p220
      %p222 = pneg %p221
      // Predicated region
      $region29: #{tpu_custom_call.1} parent=5 // pred_check
        _
      $region30: #{tpu_custom_call.1} parent=5 // pred_check_branch
        %224 = sbr.rel (%p221) target = $region32
      $region31: #{tpu_custom_call.1} parent=5 // pred_region
        %s225 = ssub.s32 %s18, 1
        %s226 = sand.u32 %s52, 1
        %s227 = scalar_lea.sflag [#allocation4], %s226
        %s228 = sand.u32 %s52, 1
        %s229 = smul.addr %s228, 128
        %s230 = scalar_lea.vmem [#allocation3], %s229
        // Predicated region
        $region33: #{tpu_custom_call.1} parent=31 // pred_check
          %p231 = pneg %p65
        $region34: #{tpu_custom_call.1} parent=31 // pred_check_branch
          %233 = sbr.rel (%p231) target = $region36
        $region35: #{tpu_custom_call.1} parent=31 // pred_region
          %234 = dma.done %s227, 2048
        $region36: #{tpu_custom_call.1} parent=31 // pred_fallthru
          _
        %s235 = sand.u32 %s80, 1
        %s236 = scalar_lea.sflag [#allocation7], %s235
        %s237 = sand.u32 %s80, 1
        %s238 = smul.addr %s237, 128
        %s239 = scalar_lea.vmem [#allocation6], %s238
        // Predicated region
        $region37: #{tpu_custom_call.1} parent=31 // pred_check
          %p240 = pneg %p93
        $region38: #{tpu_custom_call.1} parent=31 // pred_check_branch
          %242 = sbr.rel (%p240) target = $region40
        $region39: #{tpu_custom_call.1} parent=31 // pred_region
          %243 = dma.done %s236, 2048
        $region40: #{tpu_custom_call.1} parent=31 // pred_fallthru
          _
        %s244 = sand.u32 %s52, 1
        %s245 = scalar_lea.sflag [#allocation4], %s244
        %s246 = sand.u32 %s52, 1
        %s247 = smul.addr %s246, 128
        %s248 = scalar_lea.vmem [#allocation3], %s247
        %p249 = pneg %p65
        %p250 = pneg %p62
        %s251 = sand.u32 %s80, 1
        %s252 = scalar_lea.sflag [#allocation7], %s251
        %s253 = sand.u32 %s80, 1
        %s254 = smul.addr %s253, 128
        %s255 = scalar_lea.vmem [#allocation6], %s254
        %p256 = pneg %p93
        %p257 = pneg %p90
        %p258 = scmp.lt.s32.totalorder %s29, 2
        %s259 = scalar_select %p258, %s29, 2
        %s260 = scalar_lea.vmem %s2, %s259
        %p261 = pneg %p119
        %p262 = pneg %p116
        %p263 = pneg %p147
        %p264 = pneg %p144
        %s265 = sand.u32 %s134, 1
        %s266 = scalar_lea.sflag [#allocation5], %s265
        %s267 = sand.u32 %s134, 1
        %s268 = smul.addr %s267, 64
        %s269 = scalar_lea.vmem [#allocation8], %s268
        %s270 = smul.u32 16, %s28
        %s271 = smul.u32 2, %s30
        %s272 = smul.u32 32, %s30
        %p273 = scmp.lt.s32.totalorder %s29, 2
        %s274 = scalar_select %p273, %s29, 2
        %s275 = scalar_lea.vmem %s2, %s274
        %s276 = smul.u32 16, %s28
        %p278 = scmp.eq.s32.totalorder %s30, 0
        // Predicated region
        $region41: #{tpu_custom_call.1} parent=31 // pred_check
          %p279 = pneg %p278
        $region42: #{tpu_custom_call.1} parent=31 // pred_check_branch
          %281 = sbr.rel (%p279) target = $region44
        $region43: #{tpu_custom_call.1} parent=31 // pred_region
          %v282 = vld [vmem:[%s275] sm:$0x1]
          %v284 = vlaneseq
          %v285 = vshrl.u32 %v284, 7
          %v286 = vsub.s32 0, %v285
          %v287 = vrot.slane %v282, %v286
          %289 = vst [vmem:[#allocation2] sm:$0xff] %v287
          %290 = vst [vmem:[#allocation2 + $0x8] sm:$0xff] %v287
          %291 = vst [vmem:[#allocation2 + $0x10] sm:$0xff] %v287
          %292 = vst [vmem:[#allocation2 + $0x18] sm:$0xff] %v287
          %293 = vst [vmem:[#allocation2 + $0x20] sm:$0xff] %v287
          %294 = vst [vmem:[#allocation2 + $0x28] sm:$0xff] %v287
          %295 = vst [vmem:[#allocation2 + $0x30] sm:$0xff] %v287
          %296 = vst [vmem:[#allocation2 + $0x38] sm:$0xff] %v287
          %297 = vst [vmem:[#allocation2 + $0x40] sm:$0xff] %v287
          %298 = vst [vmem:[#allocation2 + $0x48] sm:$0xff] %v287
          %299 = vst [vmem:[#allocation2 + $0x50] sm:$0xff] %v287
          %300 = vst [vmem:[#allocation2 + $0x58] sm:$0xff] %v287
          %301 = vst [vmem:[#allocation2 + $0x60] sm:$0xff] %v287
          %302 = vst [vmem:[#allocation2 + $0x68] sm:$0xff] %v287
          %303 = vst [vmem:[#allocation2 + $0x70] sm:$0xff] %v287
          %304 = vst [vmem:[#allocation2 + $0x78] sm:$0xff] %v287
        $region44: #{tpu_custom_call.1} parent=31 // pred_fallthru
          _
        %v305 = vld [vmem:[%s239] sm:$0xf]
        %v306 = vld [vmem:[%s239 + $0x4] sm:$0xf]
        %v307 = vld [vmem:[%s239 + $0x8] sm:$0xf]
        %v308 = vld [vmem:[%s239 + $0xc] sm:$0xf]
        %v309 = vld [vmem:[%s239 + $0x10] sm:$0xf]
        %v310 = vld [vmem:[%s239 + $0x14] sm:$0xf]
        %v311 = vld [vmem:[%s239 + $0x18] sm:$0xf]
        %v312 = vld [vmem:[%s239 + $0x1c] sm:$0xf]
        %v313 = vld [vmem:[%s239 + $0x20] sm:$0xf]
        %v314 = vld [vmem:[%s239 + $0x24] sm:$0xf]
        %v315 = vld [vmem:[%s239 + $0x28] sm:$0xf]
        %v316 = vld [vmem:[%s239 + $0x2c] sm:$0xf]
        %v317 = vld [vmem:[%s239 + $0x30] sm:$0xf]
        %v318 = vld [vmem:[%s239 + $0x34] sm:$0xf]
        %v319 = vld [vmem:[%s239 + $0x38] sm:$0xf]
        %v320 = vld [vmem:[%s239 + $0x3c] sm:$0xf]
        %v321 = vld [vmem:[%s239 + $0x40] sm:$0xf]
        %v322 = vld [vmem:[%s239 + $0x44] sm:$0xf]
        %v323 = vld [vmem:[%s239 + $0x48] sm:$0xf]
        %v324 = vld [vmem:[%s239 + $0x4c] sm:$0xf]
        %v325 = vld [vmem:[%s239 + $0x50] sm:$0xf]
        %v326 = vld [vmem:[%s239 + $0x54] sm:$0xf]
        %v327 = vld [vmem:[%s239 + $0x58] sm:$0xf]
        %v328 = vld [vmem:[%s239 + $0x5c] sm:$0xf]
        %v329 = vld [vmem:[%s239 + $0x60] sm:$0xf]
        %v330 = vld [vmem:[%s239 + $0x64] sm:$0xf]
        %v331 = vld [vmem:[%s239 + $0x68] sm:$0xf]
        %v332 = vld [vmem:[%s239 + $0x6c] sm:$0xf]
        %v333 = vld [vmem:[%s239 + $0x70] sm:$0xf]
        %v334 = vld [vmem:[%s239 + $0x74] sm:$0xf]
        %v335 = vld [vmem:[%s239 + $0x78] sm:$0xf]
        %v336 = vld [vmem:[%s239 + $0x7c] sm:$0xf]
        %v337 = vld [vmem:[#allocation2] sm:$0xff]
        %v338 = vld [vmem:[#allocation2 + $0x8] sm:$0xff]
        %v339 = vld [vmem:[#allocation2 + $0x10] sm:$0xff]
        %v340 = vld [vmem:[#allocation2 + $0x18] sm:$0xff]
        %v341 = vld [vmem:[#allocation2 + $0x20] sm:$0xff]
        %v342 = vld [vmem:[#allocation2 + $0x28] sm:$0xff]
        %v343 = vld [vmem:[#allocation2 + $0x30] sm:$0xff]
        %v344 = vld [vmem:[#allocation2 + $0x38] sm:$0xff]
        %v345 = vld [vmem:[#allocation2 + $0x40] sm:$0xff]
        %v346 = vld [vmem:[#allocation2 + $0x48] sm:$0xff]
        %v347 = vld [vmem:[#allocation2 + $0x50] sm:$0xff]
        %v348 = vld [vmem:[#allocation2 + $0x58] sm:$0xff]
        %v349 = vld [vmem:[#allocation2 + $0x60] sm:$0xff]
        %v350 = vld [vmem:[#allocation2 + $0x68] sm:$0xff]
        %v351 = vld [vmem:[#allocation2 + $0x70] sm:$0xff]
        %v352 = vld [vmem:[#allocation2 + $0x78] sm:$0xff]
        %v353 = vld [vmem:[%s230] sm:$0xff]
        %v354 = vld [vmem:[%s230 + $0x8] sm:$0xff]
        %v355 = vld [vmem:[%s230 + $0x10] sm:$0xff]
        %v356 = vld [vmem:[%s230 + $0x18] sm:$0xff]
        %v357 = vld [vmem:[%s230 + $0x20] sm:$0xff]
        %v358 = vld [vmem:[%s230 + $0x28] sm:$0xff]
        %v359 = vld [vmem:[%s230 + $0x30] sm:$0xff]
        %v360 = vld [vmem:[%s230 + $0x38] sm:$0xff]
        %v361 = vld [vmem:[%s230 + $0x40] sm:$0xff]
        %v362 = vld [vmem:[%s230 + $0x48] sm:$0xff]
        %v363 = vld [vmem:[%s230 + $0x50] sm:$0xff]
        %v364 = vld [vmem:[%s230 + $0x58] sm:$0xff]
        %v365 = vld [vmem:[%s230 + $0x60] sm:$0xff]
        %v366 = vld [vmem:[%s230 + $0x68] sm:$0xff]
        %v367 = vld [vmem:[%s230 + $0x70] sm:$0xff]
        %v368 = vld [vmem:[%s230 + $0x78] sm:$0xff]
        %v385 = vunpack.c.l.b16 %v353
        %v386 = vunpack.c.h.b16 %v353
        %v387 = vunpack.c.l.b16 %v354
        %v388 = vunpack.c.h.b16 %v354
        %v389 = vunpack.c.l.b16 %v355
        %v390 = vunpack.c.h.b16 %v355
        %v391 = vunpack.c.l.b16 %v356
        %v392 = vunpack.c.h.b16 %v356
        %v393 = vunpack.c.l.b16 %v357
        %v394 = vunpack.c.h.b16 %v357
        %v395 = vunpack.c.l.b16 %v358
        %v396 = vunpack.c.h.b16 %v358
        %v397 = vunpack.c.l.b16 %v359
        %v398 = vunpack.c.h.b16 %v359
        %v399 = vunpack.c.l.b16 %v360
        %v400 = vunpack.c.h.b16 %v360
        %v401 = vunpack.c.l.b16 %v361
        %v402 = vunpack.c.h.b16 %v361
        %v403 = vunpack.c.l.b16 %v362
        %v404 = vunpack.c.h.b16 %v362
        %v405 = vunpack.c.l.b16 %v363
        %v406 = vunpack.c.h.b16 %v363
        %v407 = vunpack.c.l.b16 %v364
        %v408 = vunpack.c.h.b16 %v364
        %v409 = vunpack.c.l.b16 %v365
        %v410 = vunpack.c.h.b16 %v365
        %v411 = vunpack.c.l.b16 %v366
        %v412 = vunpack.c.h.b16 %v366
        %v413 = vunpack.c.l.b16 %v367
        %v414 = vunpack.c.h.b16 %v367
        %v415 = vunpack.c.l.b16 %v368
        %v416 = vunpack.c.h.b16 %v368
        %v417 = vpack.c.b16 %v387, %v385
        %v418 = vpack.c.b16 %v388, %v386
        %v419 = vpack.c.b16 %v391, %v389
        %v420 = vpack.c.b16 %v392, %v390
        %v421 = vpack.c.b16 %v395, %v393
        %v422 = vpack.c.b16 %v396, %v394
        %v423 = vpack.c.b16 %v399, %v397
        %v424 = vpack.c.b16 %v400, %v398
        %v425 = vpack.c.b16 %v403, %v401
        %v426 = vpack.c.b16 %v404, %v402
        %v427 = vpack.c.b16 %v407, %v405
        %v428 = vpack.c.b16 %v408, %v406
        %v429 = vpack.c.b16 %v411, %v409
        %v430 = vpack.c.b16 %v412, %v410
        %v431 = vpack.c.b16 %v415, %v413
        %v432 = vpack.c.b16 %v416, %v414
        %v481 = vunpack.c.l.b16 %v305
        %v482 = vunpack.c.l.b16 %v306
        %v483 = vunpack.c.l.b16 %v307
        %v484 = vunpack.c.l.b16 %v308
        %v485 = vunpack.c.l.b16 %v309
        %v486 = vunpack.c.l.b16 %v310
        %v487 = vunpack.c.l.b16 %v311
        %v488 = vunpack.c.l.b16 %v312
        %v489 = vunpack.c.l.b16 %v313
        %v490 = vunpack.c.l.b16 %v314
        %v491 = vunpack.c.l.b16 %v315
        %v492 = vunpack.c.l.b16 %v316
        %v493 = vunpack.c.l.b16 %v317
        %v494 = vunpack.c.l.b16 %v318
        %v495 = vunpack.c.l.b16 %v319
        %v496 = vunpack.c.l.b16 %v320
        %v497 = vunpack.c.l.b16 %v321
        %v498 = vunpack.c.l.b16 %v322
        %v499 = vunpack.c.l.b16 %v323
        %v500 = vunpack.c.l.b16 %v324
        %v501 = vunpack.c.l.b16 %v325
        %v502 = vunpack.c.l.b16 %v326
        %v503 = vunpack.c.l.b16 %v327
        %v504 = vunpack.c.l.b16 %v328
        %v505 = vunpack.c.l.b16 %v329
        %v506 = vunpack.c.l.b16 %v330
        %v507 = vunpack.c.l.b16 %v331
        %v508 = vunpack.c.l.b16 %v332
        %v509 = vunpack.c.l.b16 %v333
        %v510 = vunpack.c.l.b16 %v334
        %v511 = vunpack.c.l.b16 %v335
        %v512 = vunpack.c.l.b16 %v336
        %v513 = vpack.c.b16 %v482, %v481
        %v514 = vpack.c.b16 %v484, %v483
        %v515 = vpack.c.b16 %v486, %v485
        %v516 = vpack.c.b16 %v488, %v487
        %v517 = vpack.c.b16 %v490, %v489
        %v518 = vpack.c.b16 %v492, %v491
        %v519 = vpack.c.b16 %v494, %v493
        %v520 = vpack.c.b16 %v496, %v495
        %v521 = vpack.c.b16 %v498, %v497
        %v522 = vpack.c.b16 %v500, %v499
        %v523 = vpack.c.b16 %v502, %v501
        %v524 = vpack.c.b16 %v504, %v503
        %v525 = vpack.c.b16 %v506, %v505
        %v526 = vpack.c.b16 %v508, %v507
        %v527 = vpack.c.b16 %v510, %v509
        %v528 = vpack.c.b16 %v512, %v511
        %545 = vmatprep.subr.bf16.mxu0 0
        %546 = vmatpush1.bf16.msra.mxu0 %v513
        %547 = vmatprep.subr.bf16.mxu0 0
        %548 = vmatpush1.bf16.msra.mxu0 %v514
        %549 = vmatprep.subr.bf16.mxu0 0
        %550 = vmatpush1.bf16.msra.mxu0 %v515
        %551 = vmatprep.subr.bf16.mxu0 0
        %552 = vmatpush1.bf16.msra.mxu0 %v516
        %553 = vmatprep.subr.bf16.mxu0 0
        %554 = vmatpush1.bf16.msra.mxu0 %v517
        %555 = vmatprep.subr.bf16.mxu0 0
        %556 = vmatpush1.bf16.msra.mxu0 %v518
        %557 = vmatprep.subr.bf16.mxu0 0
        %558 = vmatpush1.bf16.msra.mxu0 %v519
        %559 = vmatprep.subr.bf16.mxu0 0
        %560 = vmatpush1.bf16.msra.mxu0 %v520
        %561 = vmatprep.subr.bf16.mxu0 0
        %562 = vmatpush1.bf16.msra.mxu0 %v521
        %563 = vmatprep.subr.bf16.mxu0 0
        %564 = vmatpush1.bf16.msra.mxu0 %v522
        %565 = vmatprep.subr.bf16.mxu0 0
        %566 = vmatpush1.bf16.msra.mxu0 %v523
        %567 = vmatprep.subr.bf16.mxu0 0
        %568 = vmatpush1.bf16.msra.mxu0 %v524
        %569 = vmatprep.subr.bf16.mxu0 0
        %570 = vmatpush1.bf16.msra.mxu0 %v525
        %571 = vmatprep.subr.bf16.mxu0 0
        %572 = vmatpush1.bf16.msra.mxu0 %v526
        %573 = vmatprep.subr.bf16.mxu0 0
        %574 = vmatpush1.bf16.msra.mxu0 %v527
        %575 = vmatprep.subr.bf16.mxu0 0
        %576 = vmatpush1.bf16.msra.mxu0 %v528
        %577 = vmatprep.mubr.bf16.mxu0 %v418
        %578 = vmatmul.mubr.bf16.gmra.mrb[0].mxu0 %v417
        %v579 = vpop.f32.mrb[0].mxu0
        %v580 = vadd.f32 0.0, %v579
        %v581 = vpop.f32.mrb[0].mxu0
        %v582 = vpop.f32.mrb[0].mxu0
        %v583 = vadd.f32 0.0, %v582
        %v584 = vpop.f32.mrb[0].mxu0
        %585 = vmatprep.mubr.bf16.mxu0 %v420
        %586 = vmatmul.mubr.bf16.gmra.mrb[0].mxu0 %v419
        %v587 = vpop.f32.mrb[0].mxu0
        %v588 = vadd.f32 0.0, %v587
        %v589 = vpop.f32.mrb[0].mxu0
        %v590 = vpop.f32.mrb[0].mxu0
        %v591 = vadd.f32 0.0, %v590
        %v592 = vpop.f32.mrb[0].mxu0
        %593 = vmatprep.mubr.bf16.mxu0 %v422
        %594 = vmatmul.mubr.bf16.gmra.mrb[0].mxu0 %v421
        %v595 = vpop.f32.mrb[0].mxu0
        %v596 = vadd.f32 0.0, %v595
        %v597 = vpop.f32.mrb[0].mxu0
        %v598 = vpop.f32.mrb[0].mxu0
        %v599 = vadd.f32 0.0, %v598
        %v600 = vpop.f32.mrb[0].mxu0
        %601 = vmatprep.mubr.bf16.mxu0 %v424
        %602 = vmatmul.mubr.bf16.gmra.mrb[0].mxu0 %v423
        %v603 = vpop.f32.mrb[0].mxu0
        %v604 = vadd.f32 0.0, %v603
        %v605 = vpop.f32.mrb[0].mxu0
        %v606 = vpop.f32.mrb[0].mxu0
        %v607 = vadd.f32 0.0, %v606
        %v608 = vpop.f32.mrb[0].mxu0
        %609 = vmatprep.mubr.bf16.mxu0 %v426
        %610 = vmatmul.mubr.bf16.gmra.mrb[0].mxu0 %v425
        %v611 = vpop.f32.mrb[0].mxu0
        %v612 = vadd.f32 0.0, %v611
        %v613 = vpop.f32.mrb[0].mxu0
        %v614 = vpop.f32.mrb[0].mxu0
        %v615 = vadd.f32 0.0, %v614
        %v616 = vpop.f32.mrb[0].mxu0
        %617 = vmatprep.mubr.bf16.mxu0 %v428
        %618 = vmatmul.mubr.bf16.gmra.mrb[0].mxu0 %v427
        %v619 = vpop.f32.mrb[0].mxu0
        %v620 = vadd.f32 0.0, %v619
        %v621 = vpop.f32.mrb[0].mxu0
        %v622 = vpop.f32.mrb[0].mxu0
        %v623 = vadd.f32 0.0, %v622
        %v624 = vpop.f32.mrb[0].mxu0
        %625 = vmatprep.mubr.bf16.mxu0 %v430
        %626 = vmatmul.mubr.bf16.gmra.mrb[0].mxu0 %v429
        %v627 = vpop.f32.mrb[0].mxu0
        %v628 = vadd.f32 0.0, %v627
        %v629 = vpop.f32.mrb[0].mxu0
        %v630 = vpop.f32.mrb[0].mxu0
        %v631 = vadd.f32 0.0, %v630
        %v632 = vpop.f32.mrb[0].mxu0
        %633 = vmatprep.mubr.bf16.mxu0 %v432
        %634 = vmatmul.mubr.bf16.gmra.mrb[0].mxu0 %v431
        %v635 = vpop.f32.mrb[0].mxu0
        %v636 = vadd.f32 0.0, %v635
        %v637 = vpop.f32.mrb[0].mxu0
        %v638 = vpop.f32.mrb[0].mxu0
        %v639 = vadd.f32 0.0, %v638
        %v640 = vpop.f32.mrb[0].mxu0
        %641 = vdwg.mxu0
        %v642 = vadd.f32 %v337, %v580
        %v643 = vadd.f32 %v338, %v583
        %v644 = vadd.f32 %v339, %v588
        %v645 = vadd.f32 %v340, %v591
        %v646 = vadd.f32 %v341, %v596
        %v647 = vadd.f32 %v342, %v599
        %v648 = vadd.f32 %v343, %v604
        %v649 = vadd.f32 %v344, %v607
        %v650 = vadd.f32 %v345, %v612
        %v651 = vadd.f32 %v346, %v615
        %v652 = vadd.f32 %v347, %v620
        %v653 = vadd.f32 %v348, %v623
        %v654 = vadd.f32 %v349, %v628
        %v655 = vadd.f32 %v350, %v631
        %v656 = vadd.f32 %v351, %v636
        %v657 = vadd.f32 %v352, %v639
        %658 = vst [vmem:[#allocation2] sm:$0xff] %v642
        %659 = vst [vmem:[#allocation2 + $0x8] sm:$0xff] %v643
        %660 = vst [vmem:[#allocation2 + $0x10] sm:$0xff] %v644
        %661 = vst [vmem:[#allocation2 + $0x18] sm:$0xff] %v645
        %662 = vst [vmem:[#allocation2 + $0x20] sm:$0xff] %v646
        %663 = vst [vmem:[#allocation2 + $0x28] sm:$0xff] %v647
        %664 = vst [vmem:[#allocation2 + $0x30] sm:$0xff] %v648
        %665 = vst [vmem:[#allocation2 + $0x38] sm:$0xff] %v649
        %666 = vst [vmem:[#allocation2 + $0x40] sm:$0xff] %v650
        %667 = vst [vmem:[#allocation2 + $0x48] sm:$0xff] %v651
        %668 = vst [vmem:[#allocation2 + $0x50] sm:$0xff] %v652
        %669 = vst [vmem:[#allocation2 + $0x58] sm:$0xff] %v653
        %670 = vst [vmem:[#allocation2 + $0x60] sm:$0xff] %v654
        %671 = vst [vmem:[#allocation2 + $0x68] sm:$0xff] %v655
        %672 = vst [vmem:[#allocation2 + $0x70] sm:$0xff] %v656
        %673 = vst [vmem:[#allocation2 + $0x78] sm:$0xff] %v657
        %p674 = scmp.eq.s32.totalorder %s30, 1
        // Predicated region
        $region45: #{tpu_custom_call.1} parent=31 // pred_check
          %p675 = pneg %p674
        $region46: #{tpu_custom_call.1} parent=31 // pred_check_branch
          %677 = sbr.rel (%p675) target = $region48
        $region47: #{tpu_custom_call.1} parent=31 // pred_region
          %v678 = vld [vmem:[#allocation2] sm:$0xff]
          %v679 = vld [vmem:[#allocation2 + $0x8] sm:$0xff]
          %v680 = vld [vmem:[#allocation2 + $0x10] sm:$0xff]
          %v681 = vld [vmem:[#allocation2 + $0x18] sm:$0xff]
          %v682 = vld [vmem:[#allocation2 + $0x20] sm:$0xff]
          %v683 = vld [vmem:[#allocation2 + $0x28] sm:$0xff]
          %v684 = vld [vmem:[#allocation2 + $0x30] sm:$0xff]
          %v685 = vld [vmem:[#allocation2 + $0x38] sm:$0xff]
          %v686 = vld [vmem:[#allocation2 + $0x40] sm:$0xff]
          %v687 = vld [vmem:[#allocation2 + $0x48] sm:$0xff]
          %v688 = vld [vmem:[#allocation2 + $0x50] sm:$0xff]
          %v689 = vld [vmem:[#allocation2 + $0x58] sm:$0xff]
          %v690 = vld [vmem:[#allocation2 + $0x60] sm:$0xff]
          %v691 = vld [vmem:[#allocation2 + $0x68] sm:$0xff]
          %v692 = vld [vmem:[#allocation2 + $0x70] sm:$0xff]
          %v693 = vld [vmem:[#allocation2 + $0x78] sm:$0xff]
          %v694 = vpack.c.bf16 %v679, %v678
          %v695 = vpack.c.bf16 %v681, %v680
          %v696 = vpack.c.bf16 %v683, %v682
          %v697 = vpack.c.bf16 %v685, %v684
          %v698 = vpack.c.bf16 %v687, %v686
          %v699 = vpack.c.bf16 %v689, %v688
          %v700 = vpack.c.bf16 %v691, %v690
          %v701 = vpack.c.bf16 %v693, %v692
          %v710 = vunpack.c.l.b16 %v694
          %v711 = vunpack.c.h.b16 %v694
          %v712 = vunpack.c.l.b16 %v695
          %v713 = vunpack.c.h.b16 %v695
          %v714 = vunpack.c.l.b16 %v696
          %v715 = vunpack.c.h.b16 %v696
          %v716 = vunpack.c.l.b16 %v697
          %v717 = vunpack.c.h.b16 %v697
          %v718 = vunpack.c.l.b16 %v698
          %v719 = vunpack.c.h.b16 %v698
          %v720 = vunpack.c.l.b16 %v699
          %v721 = vunpack.c.h.b16 %v699
          %v722 = vunpack.c.l.b16 %v700
          %v723 = vunpack.c.h.b16 %v700
          %v724 = vunpack.c.l.b16 %v701
          %v725 = vunpack.c.h.b16 %v701
          %v726 = vpack.c.b16 %v710, %v710
          %v727 = vpack.c.b16 %v711, %v711
          %v728 = vpack.c.b16 %v712, %v712
          %v729 = vpack.c.b16 %v713, %v713
          %v730 = vpack.c.b16 %v714, %v714
          %v731 = vpack.c.b16 %v715, %v715
          %v732 = vpack.c.b16 %v716, %v716
          %v733 = vpack.c.b16 %v717, %v717
          %v734 = vpack.c.b16 %v718, %v718
          %v735 = vpack.c.b16 %v719, %v719
          %v736 = vpack.c.b16 %v720, %v720
          %v737 = vpack.c.b16 %v721, %v721
          %v738 = vpack.c.b16 %v722, %v722
          %v739 = vpack.c.b16 %v723, %v723
          %v740 = vpack.c.b16 %v724, %v724
          %v741 = vpack.c.b16 %v725, %v725
          %758 = vst [vmem:[%s269] sm:$0xf] %v726
          %759 = vst [vmem:[%s269 + $0x4] sm:$0xf] %v727
          %760 = vst [vmem:[%s269 + $0x8] sm:$0xf] %v728
          %761 = vst [vmem:[%s269 + $0xc] sm:$0xf] %v729
          %762 = vst [vmem:[%s269 + $0x10] sm:$0xf] %v730
          %763 = vst [vmem:[%s269 + $0x14] sm:$0xf] %v731
          %764 = vst [vmem:[%s269 + $0x18] sm:$0xf] %v732
          %765 = vst [vmem:[%s269 + $0x1c] sm:$0xf] %v733
          %766 = vst [vmem:[%s269 + $0x20] sm:$0xf] %v734
          %767 = vst [vmem:[%s269 + $0x24] sm:$0xf] %v735
          %768 = vst [vmem:[%s269 + $0x28] sm:$0xf] %v736
          %769 = vst [vmem:[%s269 + $0x2c] sm:$0xf] %v737
          %770 = vst [vmem:[%s269 + $0x30] sm:$0xf] %v738
          %771 = vst [vmem:[%s269 + $0x34] sm:$0xf] %v739
          %772 = vst [vmem:[%s269 + $0x38] sm:$0xf] %v740
          %773 = vst [vmem:[%s269 + $0x3c] sm:$0xf] %v741
        $region48: #{tpu_custom_call.1} parent=31 // pred_fallthru
          _
        %s774 = sand.u32 %s134, 1
        %s775 = scalar_lea.sflag [#allocation5], %s774
        %s776 = sand.u32 %s134, 1
        %s777 = smul.addr %s776, 64
        %s778 = scalar_lea.vmem [#allocation8], %s777
        // Predicated region
        $region49: #{tpu_custom_call.1} parent=31 // pred_check
          %p779 = pneg %p144
        $region50: #{tpu_custom_call.1} parent=31 // pred_check_branch
          %781 = sbr.rel (%p779) target = $region52
        $region51: #{tpu_custom_call.1} parent=31 // pred_region
          %s782 = smul.u32 16, %s28
          %s784 = ssub.s32 1024, 1024
          %785 = vsyncadd %s775, %s784
          %s786 = smul.addr %s782, 3
          %s787 = sadd.s32 %s29, %s786
          %s788 = smul.addr %s787, 64
          %s789 = scalar_lea.hbm %s3, %s788
          %s790 = sshll.u32 %s778, 4
          %s791 = int_to_ptr.vmem [resolvable:$true] %s790
          %796 = dma.vmem_to_hbm [thread:$0]  %s791, 1024, %s789, %s775, 64, 192, 4
        $region52: #{tpu_custom_call.1} parent=31 // pred_fallthru
          _
      $region32: #{tpu_custom_call.1} parent=5 // pred_fallthru
        _
      %p797 = scmp.le.s32.totalorder 2, %s18
      // Predicated region
      $region53: #{tpu_custom_call.1} parent=5 // pred_check
        %p798 = pneg %p797
      $region54: #{tpu_custom_call.1} parent=5 // pred_check_branch
        %800 = sbr.rel (%p798) target = $region56
      $region55: #{tpu_custom_call.1} parent=5 // pred_region
        %s801 = ssub.s32 %s18, 2
        // Predicated region
        $region57: #{tpu_custom_call.1} parent=55 // pred_check
          %p802 = pneg %p150
        $region58: #{tpu_custom_call.1} parent=55 // pred_check_branch
          %804 = sbr.rel (%p802) target = $region60
        $region59: #{tpu_custom_call.1} parent=55 // pred_region
          %s805 = sand.u32 %s135, 1
          %s806 = scalar_lea.sflag [#allocation5], %s805
          %s807 = sand.u32 %s135, 1
          %s808 = smul.addr %s807, 64
          %s809 = scalar_lea.vmem [#allocation8], %s808
          %810 = dma.done %s806, 1024
        $region60: #{tpu_custom_call.1} parent=55 // pred_fallthru
          _
      $region56: #{tpu_custom_call.1} parent=5 // pred_fallthru
        _
    $region6: #{tpu_custom_call.1} parent=1 // loop_footer
      %s22 = sadd.s32 1, %s18
    $region7: #{tpu_custom_call.1} parent=1 // loop_footer_branch
      %17 = sbr.rel target = $region3
    $region8: #{tpu_custom_call.1} parent=1 // loop_exit
      _
    %811 = vsyncpa [#allocation4], 1
    %s812 = scalar_lea.sflag [#allocation4], 1
    %813 = vsyncpa %s812, 1
    %814 = vsyncpa [#allocation7], 1
    %s815 = scalar_lea.sflag [#allocation7], 1
    %816 = vsyncpa %s815, 1
    %817 = vsyncpa [#allocation5], 1
    %s818 = scalar_lea.sflag [#allocation5], 1
    %819 = vsyncpa %s818, 1

</llo_original>
